<compile_context>
chip_gen: v7x
topology: tpu7x:2x2x1
jax: 0.10.0
libtpu: 0.0.40
codegen_flags: <defaults>
</compile_context>

<pallas_src>
import functools

import jax
import jax.numpy as jnp
import numpy as np
from jax.experimental import pallas as pl
from jax.experimental.pallas import tpu as pltpu


def _actor_critic_kernel(
    # --- SMEM scalar-prefetch refs -------------------------------------------
    edge_src_ref,       # (E,)  int32  edge sources  (edge_index[0])
    edge_tgt_ref,       # (E,)  int32  edge targets  (edge_index[1])
    tgt_ref,            # (1,)  int32  target node index
    # --- VMEM inputs ----------------------------------------------------------
    x_ref,              # (N, C)   node features (bf16 or f32)
    w1_ref,             # (C, H)   conv1.linear weight, transposed (bf16 or f32)
    b1_ref,             # (1, H)   conv1.linear bias (f32)
    wh_ref,             # (H, P)   fused [mu | critic | 0-pad] head weight
    bh_ref,             # (1, P)   fused head bias (f32)
    # --- VMEM output ----------------------------------------------------------
    out_ref,            # (1, P)   f32 lane-dense fused output [mu(0:A) | value(A) | junk]
    *,
    num_actions,
    num_edges,
    alpha,
):
    n = x_ref.shape[0]
    tgt = tgt_ref[0]
    lane = jax.lax.broadcasted_iota(jnp.int32, (1, n), 1)

    # Build the target node's in-edge multiplicity row on the VPU:
    #   row[j] = #edges (j -> tgt).  Short fori_loop over E edges; each step is
    #   one iota-compare + add.  deg (in-degree of tgt) is just sum(row).
    def edge_body(e, row):
        src_e = edge_src_ref[e]
        hit = (lane == src_e) & (edge_tgt_ref[e] == tgt)
        return row + hit.astype(jnp.float32)

    row = jax.lax.fori_loop(0, num_edges, edge_body,
                            jnp.zeros((1, n), jnp.float32))
    deg = jnp.sum(row, axis=1, keepdims=True)                    # (1, 1)
    deg_inv = jnp.where(deg > 0.0, 1.0 / deg, 0.0)

    # a_row = alpha * mean-normalized row, with the "+ x_t" residual folded in.
    a_row = (alpha * deg_inv) * row + (lane == tgt).astype(jnp.float32)

    # Aggregation + residual in one MXU pass: (1, N) @ (N, C) -> (1, C), f32 acc.
    h_in = jnp.dot(a_row.astype(x_ref.dtype), x_ref[...],
                   preferred_element_type=jnp.float32)

    # conv1 linear + ReLU on the target row only: (1, C) @ (C, H) -> (1, H).
    h = jnp.maximum(
        jnp.dot(h_in.astype(w1_ref.dtype), w1_ref[...],
                preferred_element_type=jnp.float32) + b1_ref[...],
        0.0,
    )

    # Fused actor/critic head: (1, H) @ (H, P) -> (1, P), single lane-dense store.
    z = jnp.dot(h.astype(wh_ref.dtype), wh_ref[...],
                preferred_element_type=jnp.float32) + bh_ref[...]
    out_lane = jax.lax.broadcasted_iota(jnp.int32, z.shape, 1)
    out_ref[...] = jnp.where(out_lane < num_actions, jax.nn.sigmoid(z), z)


def prepare_params(params, *, compute_dtype=jnp.bfloat16):
    """One-time parameter layout prep (hoisted out of the per-forward path).

    PyTorch nn.Linear layout is [out, in]; here weights are stored transposed
    ([in, out]) and the mu / critic heads are fused into one lane-dense [H, P]
    weight (P = 128).  Large weights are stored in `compute_dtype` (bf16 by
    default); biases stay f32 so the in-kernel bias/ReLU/sigmoid math is f32.
    """
    H, C = params["w1"].shape
    A = params["wmu"].shape[0]
    P = ((A + 1 + 127) // 128) * 128          # fused output width, lane-dense

    w1t = jnp.asarray(params["w1"].T, compute_dtype)              # (C, H)
    b1 = jnp.asarray(params["b1"], jnp.float32).reshape(1, H)     # (1, H)

    wh = jnp.zeros((H, P), jnp.float32)
    wh = wh.at[:, :A].set(params["wmu"].T)                        # actor head
    wh = wh.at[:, A:A + 1].set(params["wc"].T)                    # critic head
    wh = wh.astype(compute_dtype)

    bh = jnp.zeros((1, P), jnp.float32)
    bh = bh.at[:, :A].set(params["bmu"].reshape(1, A))
    bh = bh.at[:, A:A + 1].set(params["bc"].reshape(1, 1))

    return {"w1": w1t, "b1": b1, "wh": wh, "bh": bh}


@functools.partial(jax.jit, static_argnames=("num_actions", "alpha"))
def actor_critic_forward(x, edge_index, target_node_index, prep, *,
                         num_actions, alpha=1e-4):
    """JAX/Pallas equivalent of ActorCriticNetwork.forward(data, target_node_index)."""
    N, C = x.shape
    H = prep["w1"].shape[1]
    P = prep["wh"].shape[1]
    E = edge_index.shape[1]
    A = num_actions

    x_c = x.astype(prep["w1"].dtype)
    edge_src = edge_index[0].astype(jnp.int32)
    edge_tgt = edge_index[1].astype(jnp.int32)
    tgt = jnp.asarray(target_node_index, jnp.int32).reshape(1)

    # Advisory scheduling hints + explicit scoped-VMEM sizing.
    input_bytes = (x_c.size * x_c.dtype.itemsize
                   + prep["w1"].size * prep["w1"].dtype.itemsize
                   + prep["wh"].size * prep["wh"].dtype.itemsize
                   + prep["b1"].size * 4 + prep["bh"].size * 4)
    cost = pl.CostEstimate(
        flops=2 * (N * C + C * H + H * P) + 2 * E * N,
        transcendentals=P,
        bytes_accessed=input_bytes + P * 4 + 2 * E * 4 + 4,
    )
    vmem_limit = min(max(2 * input_bytes + (1 << 20), 32 * 1024 * 1024),
                     128 * 1024 * 1024)

    grid_spec = pltpu.PrefetchScalarGridSpec(
        num_scalar_prefetch=3,                 # edge_src, edge_tgt, tgt -> SMEM
        grid=(1,),
        in_specs=[
            pl.BlockSpec((N, C), lambda i, *_: (0, 0)),   # x
            pl.BlockSpec((C, H), lambda i, *_: (0, 0)),   # w1 (no hidden pad)
            pl.BlockSpec((1, H), lambda i, *_: (0, 0)),   # b1
            pl.BlockSpec((H, P), lambda i, *_: (0, 0)),   # fused head weight
            pl.BlockSpec((1, P), lambda i, *_: (0, 0)),   # fused head bias
        ],
        out_specs=pl.BlockSpec((1, P), lambda i, *_: (0, 0)),
    )

    out = pl.pallas_call(
        functools.partial(_actor_critic_kernel,
                          num_actions=A, num_edges=E, alpha=alpha),
        out_shape=jax.ShapeDtypeStruct((1, P), jnp.float32),
        grid_spec=grid_spec,
        compiler_params=pltpu.CompilerParams(
            dimension_semantics=("arbitrary",),
            vmem_limit_bytes=vmem_limit,
        ),
        cost_estimate=cost,
    )(edge_src, edge_tgt, tgt, x_c, prep["w1"], prep["b1"], prep["wh"], prep["bh"])

    mu = out[0, :A]
    value = out[0, A:A + 1]
    std = jnp.asarray(1e-5, jnp.float32)                  # matches torch.tensor(1e-05)
    return mu, std, value


def _ref_forward(x, edge_index, target_node_index, params, num_nodes, alpha=1e-4):
    """Pure-JAX f32 reference (full-graph, literal transcription of the module)."""
    N = num_nodes
    src, tgt = edge_index[0], edge_index[1]
    counts = jnp.zeros((N,), jnp.float32).at[tgt].add(1.0)
    adj = jnp.zeros((N, N), jnp.float32).at[tgt, src].add(1.0)
    deg_inv = jnp.where(counts > 0, 1.0 / counts, 0.0)
    aggr = alpha * (adj * deg_inv[:, None]) @ x
    h = jax.nn.relu((aggr + x) @ params["w1"].T + params["b1"])
    h_t = h[target_node_index]
    mu = jax.nn.sigmoid(h_t @ params["wmu"].T + params["bmu"])
    val = h_t @ params["wc"].T + params["bc"]
    return mu, jnp.asarray(1e-5, jnp.float32), val


if __name__ == "__main__":
    # Small shapes consistent with the module (scaled-down in_channels).
    N = 16            # number of graph nodes
    C = 128           # in_channels (module default is 768; small here)
    H = 64            # hidden_channels
    A = 3             # num_actions
    E = 40            # number of edges
    TARGET = 5

    key = jax.random.PRNGKey(0)
    k_x, k_e0, k_e1, k_w1, k_b1, k_wmu, k_bmu, k_wc, k_bc = jax.random.split(key, 9)

    x = jax.random.normal(k_x, (N, C), jnp.float32)
    edge_index = jnp.stack(
        [
            jax.random.randint(k_e0, (E,), 0, N, jnp.int32),
            jax.random.randint(k_e1, (E,), 0, N, jnp.int32),
        ],
        axis=0,
    )

    # Deterministic parameter init (PyTorch nn.Linear layout: weight [out, in]).
    params = {
        "w1": jax.random.normal(k_w1, (H, C), jnp.float32) * (1.0 / np.sqrt(C)),
        "b1": jax.random.normal(k_b1, (H,), jnp.float32) * 0.01,
        "wmu": jax.random.normal(k_wmu, (A, H), jnp.float32) * (1.0 / np.sqrt(H)),
        "bmu": jax.random.normal(k_bmu, (A,), jnp.float32) * 0.01,
        "wc": jax.random.normal(k_wc, (1, H), jnp.float32) * (1.0 / np.sqrt(H)),
        "bc": jax.random.normal(k_bc, (1,), jnp.float32) * 0.01,
    }

    mu_ref, std_ref, val_ref = _ref_forward(x, edge_index, TARGET, params, N)

    # Default (bf16-operand) path: one-time param prep, then the forward call.
    prep_bf16 = prepare_params(params)                     # compute_dtype=bf16
    mu, std, value = actor_critic_forward(x, edge_index, TARGET, prep_bf16,
                                          num_actions=A)
    jax.block_until_ready((mu, std, value))
    np.testing.assert_allclose(np.asarray(mu), np.asarray(mu_ref),
                               rtol=3e-2, atol=3e-2)       # bf16 operand storage
    np.testing.assert_allclose(np.asarray(value), np.asarray(val_ref),
                               rtol=3e-2, atol=3e-2)
    assert float(std) == float(std_ref)

    # f32 operand-storage path (tighter precision), same kernel.
    prep_f32 = prepare_params(params, compute_dtype=jnp.float32)
    mu32, _, val32 = actor_critic_forward(x, edge_index, TARGET, prep_f32,
                                          num_actions=A)
    jax.block_until_ready((mu32, val32))
    np.testing.assert_allclose(np.asarray(mu32), np.asarray(mu_ref),
                               rtol=1e-2, atol=1e-2)
    np.testing.assert_allclose(np.asarray(val32), np.asarray(val_ref),
                               rtol=1e-2, atol=1e-2)

    print("KERNEL_OK")
</pallas_src>

<mosaic_0001>
module attributes {stable_mosaic.version = 11 : i64} {
  func.func @_actor_critic_kernel(%arg0: i32, %arg1: memref<40xi32, #tpu.memory_space<smem>>, %arg2: memref<40xi32, #tpu.memory_space<smem>>, %arg3: memref<1xi32, #tpu.memory_space<smem>>, %arg4: memref<16x128xbf16, #tpu.memory_space<vmem>>, %arg5: memref<128x64xbf16, #tpu.memory_space<vmem>>, %arg6: memref<1x64xf32, #tpu.memory_space<vmem>>, %arg7: memref<64x128xbf16, #tpu.memory_space<vmem>>, %arg8: memref<1x128xf32, #tpu.memory_space<vmem>>, %arg9: memref<1x128xf32, #tpu.memory_space<vmem>>) attributes {dimension_semantics = [#tpu.dimension_semantics<arbitrary>], iteration_bounds = array<i64: 1>, scalar_prefetch = 3 : i64, scratch_operands = 0 : i64, tpu.core_type = #tpu.core_type<tc>, window_params = [{pipeline_mode = #tpu.pipeline_mode<synchronous>, transform_indices = @transform_0, window_bounds = array<i64: 16, 128>}, {pipeline_mode = #tpu.pipeline_mode<synchronous>, transform_indices = @transform_1, window_bounds = array<i64: 128, 64>}, {pipeline_mode = #tpu.pipeline_mode<synchronous>, transform_indices = @transform_2, window_bounds = array<i64: 1, 64>}, {pipeline_mode = #tpu.pipeline_mode<synchronous>, transform_indices = @transform_3, window_bounds = array<i64: 64, 128>}, {pipeline_mode = #tpu.pipeline_mode<synchronous>, transform_indices = @transform_4, window_bounds = array<i64: 1, 128>}, {pipeline_mode = #tpu.pipeline_mode<synchronous>, transform_indices = @transform_5, window_bounds = array<i64: 1, 128>}]} {
    %c0 = arith.constant 0 : index
    %0 = memref.load %arg3[%c0] : memref<1xi32, #tpu.memory_space<smem>>
    %1 = tpu.iota {dimensions = array<i32: 1>} : vector<1x16xi32>
    %cst = arith.constant 0.000000e+00 : f32
    %2 = vector.broadcast %cst : f32 to vector<1x16xf32>
    %c0_i32 = arith.constant 0 : i32
    %c40_i32 = arith.constant 40 : i32
    %3 = arith.addi %c0_i32, %c40_i32 : i32
    %c1_i32 = arith.constant 1 : i32
    %4 = scf.for %arg10 = %c0_i32 to %3 step %c1_i32 iter_args(%arg11 = %2) -> (vector<1x16xf32>)  : i32 {
      %47 = arith.index_cast %arg10 : i32 to index
      %48 = memref.load %arg1[%47] : memref<40xi32, #tpu.memory_space<smem>>
      %49 = vector.broadcast %48 : i32 to vector<1x16xi32>
      %50 = arith.cmpi eq, %1, %49 : vector<1x16xi32>
      %51 = arith.index_cast %arg10 : i32 to index
      %52 = memref.load %arg2[%51] : memref<40xi32, #tpu.memory_space<smem>>
      %53 = arith.cmpi eq, %52, %0 : i32
      %54 = vector.broadcast %53 : i1 to vector<1x16xi1>
      %55 = arith.andi %50, %54 : vector<1x16xi1>
      %56 = arith.extui %55 : vector<1x16xi1> to vector<1x16xi32>
      %57 = arith.sitofp %56 : vector<1x16xi32> to vector<1x16xf32>
      %58 = arith.addf %arg11, %57 : vector<1x16xf32>
      scf.yield %58 : vector<1x16xf32>
    }
    %c40_i32_0 = arith.constant 40 : i32
    %cst_1 = arith.constant dense<0.000000e+00> : vector<1xf32>
    %5 = vector.multi_reduction <add>, %4, %cst_1 [1] : vector<1x16xf32> to vector<1xf32>
    %6 = vector.shape_cast %5 : vector<1xf32> to vector<1x1xf32>
    %cst_2 = arith.constant 0.000000e+00 : f32
    %7 = vector.broadcast %cst_2 : f32 to vector<1x1xf32>
    %8 = arith.cmpf ogt, %6, %7 : vector<1x1xf32>
    %cst_3 = arith.constant 1.000000e+00 : f32
    %9 = vector.broadcast %cst_3 : f32 to vector<1x1xf32>
    %10 = arith.divf %9, %6 : vector<1x1xf32>
    %cst_4 = arith.constant 0.000000e+00 : f32
    %11 = vector.broadcast %cst_4 : f32 to vector<1x1xf32>
    %12 = arith.select %8, %10, %11 : vector<1x1xi1>, vector<1x1xf32>
    %cst_5 = arith.constant 9.99999974E-5 : f32
    %13 = vector.broadcast %cst_5 : f32 to vector<1x1xf32>
    %14 = arith.mulf %13, %12 : vector<1x1xf32>
    %15 = vector.broadcast %14 : vector<1x1xf32> to vector<1x16xf32>
    %16 = arith.mulf %15, %4 : vector<1x16xf32>
    %17 = vector.broadcast %0 : i32 to vector<1x16xi32>
    %18 = arith.cmpi eq, %1, %17 : vector<1x16xi32>
    %19 = arith.extui %18 : vector<1x16xi1> to vector<1x16xi32>
    %20 = arith.sitofp %19 : vector<1x16xi32> to vector<1x16xf32>
    %21 = arith.addf %16, %20 : vector<1x16xf32>
    %22 = arith.truncf %21 : vector<1x16xf32> to vector<1x16xbf16>
    %c0_6 = arith.constant 0 : index
    %c0_7 = arith.constant 0 : index
    %23 = vector.load %arg4[%c0_6, %c0_7] : memref<16x128xbf16, #tpu.memory_space<vmem>>, vector<16x128xbf16>
    %cst_8 = arith.constant dense<0.000000e+00> : vector<1x128xf32>
    %24 = tpu.matmul %22, %23, %cst_8 {dimension_numbers = #tpu.dot_dimension_numbers<[1], [0], [0], [1], [0, 0, 1, 1], [], []>} : vector<1x16xbf16>, vector<16x128xbf16>, vector<1x128xf32> -> vector<1x128xf32>
    %25 = arith.truncf %24 : vector<1x128xf32> to vector<1x128xbf16>
    %c0_9 = arith.constant 0 : index
    %c0_10 = arith.constant 0 : index
    %26 = vector.load %arg5[%c0_9, %c0_10] : memref<128x64xbf16, #tpu.memory_space<vmem>>, vector<128x64xbf16>
    %cst_11 = arith.constant dense<0.000000e+00> : vector<1x64xf32>
    %27 = tpu.matmul %25, %26, %cst_11 {dimension_numbers = #tpu.dot_dimension_numbers<[1], [0], [0], [1], [0, 0, 1, 1], [], []>} : vector<1x128xbf16>, vector<128x64xbf16>, vector<1x64xf32> -> vector<1x64xf32>
    %c0_12 = arith.constant 0 : index
    %c0_13 = arith.constant 0 : index
    %28 = vector.load %arg6[%c0_12, %c0_13] : memref<1x64xf32, #tpu.memory_space<vmem>>, vector<1x64xf32>
    %29 = arith.addf %27, %28 : vector<1x64xf32>
    %cst_14 = arith.constant 0.000000e+00 : f32
    %30 = vector.broadcast %cst_14 : f32 to vector<1x64xf32>
    %31 = arith.maximumf %29, %30 : vector<1x64xf32>
    %32 = arith.truncf %31 : vector<1x64xf32> to vector<1x64xbf16>
    %c0_15 = arith.constant 0 : index
    %c0_16 = arith.constant 0 : index
    %33 = vector.load %arg7[%c0_15, %c0_16] : memref<64x128xbf16, #tpu.memory_space<vmem>>, vector<64x128xbf16>
    %cst_17 = arith.constant dense<0.000000e+00> : vector<1x128xf32>
    %34 = tpu.matmul %32, %33, %cst_17 {dimension_numbers = #tpu.dot_dimension_numbers<[1], [0], [0], [1], [0, 0, 1, 1], [], []>} : vector<1x64xbf16>, vector<64x128xbf16>, vector<1x128xf32> -> vector<1x128xf32>
    %c0_18 = arith.constant 0 : index
    %c0_19 = arith.constant 0 : index
    %35 = vector.load %arg8[%c0_18, %c0_19] : memref<1x128xf32, #tpu.memory_space<vmem>>, vector<1x128xf32>
    %36 = arith.addf %34, %35 : vector<1x128xf32>
    %37 = tpu.iota {dimensions = array<i32: 1>} : vector<1x128xi32>
    %c3_i32 = arith.constant 3 : i32
    %38 = vector.broadcast %c3_i32 : i32 to vector<1x128xi32>
    %39 = arith.cmpi slt, %37, %38 : vector<1x128xi32>
    %40 = arith.negf %36 : vector<1x128xf32>
    %41 = math.exp %40 : vector<1x128xf32>
    %cst_20 = arith.constant 1.000000e+00 : f32
    %42 = vector.broadcast %cst_20 : f32 to vector<1x128xf32>
    %43 = arith.addf %42, %41 : vector<1x128xf32>
    %44 = arith.divf %42, %43 : vector<1x128xf32>
    %45 = arith.select %39, %44, %36 : vector<1x128xi1>, vector<1x128xf32>
    %c0_21 = arith.constant 0 : index
    %c0_22 = arith.constant 0 : index
    %46 = vector.load %arg9[%c0_21, %c0_22] : memref<1x128xf32, #tpu.memory_space<vmem>>, vector<1x128xf32>
    tpu.vector_store %arg9[%c0_21, %c0_22], %45 {strides = array<i32>} : memref<1x128xf32, #tpu.memory_space<vmem>>, vector<1x128xf32>,
    return
  }
  func.func @transform_0(%arg0: i32, %arg1: memref<40xi32, #tpu.memory_space<smem>>, %arg2: memref<40xi32, #tpu.memory_space<smem>>, %arg3: memref<1xi32, #tpu.memory_space<smem>>) -> (i32, i32) {
    %c0_i32 = arith.constant 0 : i32
    %c0_i32_0 = arith.constant 0 : i32
    %c0_i32_1 = arith.constant 0 : i32
    return %c0_i32, %c0_i32_0 : i32, i32
  }
  func.func @transform_1(%arg0: i32, %arg1: memref<40xi32, #tpu.memory_space<smem>>, %arg2: memref<40xi32, #tpu.memory_space<smem>>, %arg3: memref<1xi32, #tpu.memory_space<smem>>) -> (i32, i32) {
    %c0_i32 = arith.constant 0 : i32
    %c0_i32_0 = arith.constant 0 : i32
    %c0_i32_1 = arith.constant 0 : i32
    return %c0_i32, %c0_i32_0 : i32, i32
  }
  func.func @transform_2(%arg0: i32, %arg1: memref<40xi32, #tpu.memory_space<smem>>, %arg2: memref<40xi32, #tpu.memory_space<smem>>, %arg3: memref<1xi32, #tpu.memory_space<smem>>) -> (i32, i32) {
    %c0_i32 = arith.constant 0 : i32
    %c0_i32_0 = arith.constant 0 : i32
    %c0_i32_1 = arith.constant 0 : i32
    return %c0_i32, %c0_i32_0 : i32, i32
  }
  func.func @transform_3(%arg0: i32, %arg1: memref<40xi32, #tpu.memory_space<smem>>, %arg2: memref<40xi32, #tpu.memory_space<smem>>, %arg3: memref<1xi32, #tpu.memory_space<smem>>) -> (i32, i32) {
    %c0_i32 = arith.constant 0 : i32
    %c0_i32_0 = arith.constant 0 : i32
    %c0_i32_1 = arith.constant 0 : i32
    return %c0_i32, %c0_i32_0 : i32, i32
  }
  func.func @transform_4(%arg0: i32, %arg1: memref<40xi32, #tpu.memory_space<smem>>, %arg2: memref<40xi32, #tpu.memory_space<smem>>, %arg3: memref<1xi32, #tpu.memory_space<smem>>) -> (i32, i32) {
    %c0_i32 = arith.constant 0 : i32
    %c0_i32_0 = arith.constant 0 : i32
    %c0_i32_1 = arith.constant 0 : i32
    return %c0_i32, %c0_i32_0 : i32, i32
  }
  func.func @transform_5(%arg0: i32, %arg1: memref<40xi32, #tpu.memory_space<smem>>, %arg2: memref<40xi32, #tpu.memory_space<smem>>, %arg3: memref<1xi32, #tpu.memory_space<smem>>) -> (i32, i32) {
    %c0_i32 = arith.constant 0 : i32
    %c0_i32_0 = arith.constant 0 : i32
    %c0_i32_1 = arith.constant 0 : i32
    return %c0_i32, %c0_i32_0 : i32, i32
  }
}

</mosaic_0001>

<llo_original>
// kernel: actor_critic_forward.1
$region0: #{actor_critic_forward.1}
  #allocation0 [shape = 'u32[]', space=smem, size = 0x4, offset = 0x4, fixed_abs, tag = 'smem constant byte address 0x4 - core index']
  #allocation1 [shape = 'u32[144,128]{1,0:T(1,128)}', space=vmem, size = 0x12000, scoped, tag = 'internal scratch']
  #allocation2 [shape = 's32[1]{0}', space=sflag, size = 0x4, scoped, tag = 'scoped memory for actor_critic_forward.1']
  #allocation3 [shape = 'u8[512]{0}', space=smem, size = 0x200, scoped, tag = 'prefetched SMEM operand 0']
  #allocation4 [shape = 'u8[512]{0}', space=smem, size = 0x200, scoped, tag = 'prefetched SMEM operand 1']
  #allocation5 [shape = 's32[1]{0:T(128)S(6)}', space=smem, size = 0x200, scoped, tag = 'prefetched SMEM operand 2']
  %s0 = inlined_call_operand.vmem [shape: s32[40], index: 0, kind: input, shape index: {}]
  %s1 = inlined_call_operand.vmem [shape: s32[40], index: 1, kind: input, shape index: {}]
  %s2 = inlined_call_operand.<no memory space> [shape: s32[1], index: 2, kind: input, shape index: {}]
  %s3 = inlined_call_operand.vmem [shape: bf16[16,128], index: 3, kind: input, shape index: {}]
  %s4 = inlined_call_operand.vmem [shape: bf16[128,64], index: 4, kind: input, shape index: {}]
  %s5 = inlined_call_operand.vmem [shape: f32[1,64], index: 5, kind: input, shape index: {}]
  %s6 = inlined_call_operand.vmem [shape: bf16[64,128], index: 6, kind: input, shape index: {}]
  %s7 = inlined_call_operand.vmem [shape: f32[1,128], index: 7, kind: input, shape index: {}]
  %s8 = inlined_call_operand.vmem [shape: f32[1,128], index: 8, kind: output, shape index: {}]
  %s9 = sld [smem:[#allocation0]]
  $region37: #{actor_critic_forward.1} parent=0
    _
  %s11 = ssub.s32 1, %s9
  %s12 = scalar_select 0, %s11, %s9
  %s13 = sshll.u32 %s0, 4
  %s14 = int_to_ptr.vmem [resolvable:$true] %s13
  %16 = dma.vmem_to_smem %s14, 16, [#allocation3], [#allocation2]
  %s17 = sshll.u32 %s1, 4
  %s18 = int_to_ptr.vmem [resolvable:$true] %s17
  %20 = dma.vmem_to_smem %s18, 16, [#allocation4], [#allocation2]
  %21 = sst [smem:[#allocation5]] %s2
  %22 = dma.done [#allocation2], 32
  %23 = sfence
  // Predicated region
  $region2: #{actor_critic_forward.1} parent=0 // pred_check
    _
  $region3: #{actor_critic_forward.1} parent=0 // pred_check_branch
    %25 = sbr.rel (0) target = $region5
  $region4: #{actor_critic_forward.1} parent=0 // pred_region
    _
  $region5: #{actor_critic_forward.1} parent=0 // pred_fallthru
    _
  // Predicated region
  $region6: #{actor_critic_forward.1} parent=0 // pred_check
    _
  $region7: #{actor_critic_forward.1} parent=0 // pred_check_branch
    %27 = sbr.rel (0) target = $region9
  $region8: #{actor_critic_forward.1} parent=0 // pred_region
    _
  $region9: #{actor_critic_forward.1} parent=0 // pred_fallthru
    _
  // Predicated region
  $region10: #{actor_critic_forward.1} parent=0 // pred_check
    _
  $region11: #{actor_critic_forward.1} parent=0 // pred_check_branch
    %29 = sbr.rel (0) target = $region13
  $region12: #{actor_critic_forward.1} parent=0 // pred_region
    _
  $region13: #{actor_critic_forward.1} parent=0 // pred_fallthru
    _
  // Predicated region
  $region14: #{actor_critic_forward.1} parent=0 // pred_check
    _
  $region15: #{actor_critic_forward.1} parent=0 // pred_check_branch
    %31 = sbr.rel (0) target = $region17
  $region16: #{actor_critic_forward.1} parent=0 // pred_region
    _
  $region17: #{actor_critic_forward.1} parent=0 // pred_fallthru
    _
  // Predicated region
  $region18: #{actor_critic_forward.1} parent=0 // pred_check
    _
  $region19: #{actor_critic_forward.1} parent=0 // pred_check_branch
    %33 = sbr.rel (0) target = $region21
  $region20: #{actor_critic_forward.1} parent=0 // pred_region
    _
  $region21: #{actor_critic_forward.1} parent=0 // pred_fallthru
    _
  %s35 = sld [smem:[#allocation5]]
  %v36 = vlaneseq
  %v37 = vand.u32 %v36, 127
  loop: start=0, step=1, limit=40
  $region22: #{actor_critic_forward.1} parent=0 // loop_pre_header
    _
  $region23: #{actor_critic_forward.1} parent=0 // loop_header
    %s39 = sphi 0, %s43
    %p40 = scmp.ge.s32.totalorder %s39, 40
    %v44 = vphi 0.0, %v56
  $region24: #{actor_critic_forward.1} parent=0 // loop_header_branch
    %42 = sbr.rel (%p40) target = $region28
  $region25: #{actor_critic_forward.1} parent=0 // loop_body
    %s45 = sld [smem:[#allocation3 + %s39]]
    %v46 = vstv %s45
    %vm47 = vcmp.eq.s32.totalorder %v37, %v46
    %s48 = sld [smem:[#allocation4 + %s39]]
    %p49 = scmp.eq.s32.totalorder %s48, %s35
    %s50 = scalar_select %p49, 1, 0
    %v51 = vstv %s50
    %vm52 = vcmp.eq.s32.totalorder %v51, 1
    %vm53 = vmand %vm47, %vm52
    %v54 = vsel %vm53, 1, 0
    %v55 = vcvt.s32.f32 %v54
    %v56 = vadd.f32 %v44, %v55
  $region26: #{actor_critic_forward.1} parent=0 // loop_footer
    %s43 = sadd.s32 1, %s39
  $region27: #{actor_critic_forward.1} parent=0 // loop_footer_branch
    %38 = sbr.rel target = $region23
  $region28: #{actor_critic_forward.1} parent=0 // loop_exit
    _
  %vm57 = vcmask 130048
  %v58 = vsel %vm57, %v44, 0.0
  %59 = vadd.xlane.f32.xlu0 %v58
  %v60 = vpop.xlane.xlu0 %59
  %vm61 = vcmp.gt.f32.partialorder %v60, 0.0
  %v62 = vrcp.pop %v60
  %v63 = vmul.f32 1.0, %v62
  %v64 = vsel %vm61, %v63, 0.0
  %v65 = vmul.f32 %v64, 0.0001
  %v66 = vmul.f32 %v65, %v44
  %v67 = vstv %s35
  %vm68 = vcmp.eq.s32.totalorder %v37, %v67
  %v69 = vsel %vm68, 1, 0
  %v70 = vcvt.s32.f32 %v69
  %v71 = vadd.f32 %v66, %v70
  %v72 = vpack.c.bf16 %v71, %v71
  %v73 = vld [vmem:[%s3] sm:$0xf]
  %v74 = vld [vmem:[%s3 + $0x4] sm:$0xf]
  %v77 = vunpack.c.l.b16 %v73
  %v78 = vunpack.c.l.b16 %v74
  %v79 = vpack.c.b16 %v78, %v77
  %v82 = vsel %vm57, %v72, 0
  %84 = vmatprep.subr.bf16.mxu0 0
  %85 = vmatpush1.bf16.msra.mxu0 %v79
  %86 = vmatprep.subr.bf16.mxu0 0
  %87 = vmatpush1.bf16.msra.mxu0 0
  %88 = vmatprep.subr.bf16.mxu0 0
  %89 = vmatpush1.bf16.msra.mxu0 0
  %90 = vmatprep.subr.bf16.mxu0 0
  %91 = vmatpush1.bf16.msra.mxu0 0
  %92 = vmatprep.subr.bf16.mxu0 0
  %93 = vmatpush1.bf16.msra.mxu0 0
  %94 = vmatprep.subr.bf16.mxu0 0
  %95 = vmatpush1.bf16.msra.mxu0 0
  %96 = vmatprep.subr.bf16.mxu0 0
  %97 = vmatpush1.bf16.msra.mxu0 0
  %98 = vmatprep.subr.bf16.mxu0 0
  %99 = vmatpush1.bf16.msra.mxu0 0
  %100 = vmatprep.subr.bf16.mxu0 0
  %101 = vmatpush1.bf16.msra.mxu0 0
  %102 = vmatprep.subr.bf16.mxu0 0
  %103 = vmatpush1.bf16.msra.mxu0 0
  %104 = vmatprep.subr.bf16.mxu0 0
  %105 = vmatpush1.bf16.msra.mxu0 0
  %106 = vmatprep.subr.bf16.mxu0 0
  %107 = vmatpush1.bf16.msra.mxu0 0
  %108 = vmatprep.subr.bf16.mxu0 0
  %109 = vmatpush1.bf16.msra.mxu0 0
  %110 = vmatprep.subr.bf16.mxu0 0
  %111 = vmatpush1.bf16.msra.mxu0 0
  %112 = vmatprep.subr.bf16.mxu0 0
  %113 = vmatpush1.bf16.msra.mxu0 0
  %114 = vmatprep.subr.bf16.mxu0 0
  %115 = vmatpush1.bf16.msra.mxu0 0
  %116 = vmatprep.mubr.bf16.mxu0 0
  %117 = vmatmul.mubr.bf16.gmra.mrb[0].mxu0 %v82
  %v118 = vpop.f32.mrb[0].mxu0
  %v119 = vadd.f32 0.0, %v118
  %v120 = vpop.f32.mrb[0].mxu0
  %v121 = vpop.f32.mrb[0].mxu0
  %v122 = vpop.f32.mrb[0].mxu0
  %123 = vdwg.mxu0
  %v124 = vpack.c.bf16 %v119, %v119
  %v125 = vld [vmem:[%s4] sm:$0xf]
  %v126 = vld [vmem:[%s4 + $0x4] sm:$0xf]
  %v127 = vld [vmem:[%s4 + $0x8] sm:$0xf]
  %v128 = vld [vmem:[%s4 + $0xc] sm:$0xf]
  %v129 = vld [vmem:[%s4 + $0x10] sm:$0xf]
  %v130 = vld [vmem:[%s4 + $0x14] sm:$0xf]
  %v131 = vld [vmem:[%s4 + $0x18] sm:$0xf]
  %v132 = vld [vmem:[%s4 + $0x1c] sm:$0xf]
  %v133 = vld [vmem:[%s4 + $0x20] sm:$0xf]
  %v134 = vld [vmem:[%s4 + $0x24] sm:$0xf]
  %v135 = vld [vmem:[%s4 + $0x28] sm:$0xf]
  %v136 = vld [vmem:[%s4 + $0x2c] sm:$0xf]
  %v137 = vld [vmem:[%s4 + $0x30] sm:$0xf]
  %v138 = vld [vmem:[%s4 + $0x34] sm:$0xf]
  %v139 = vld [vmem:[%s4 + $0x38] sm:$0xf]
  %v140 = vld [vmem:[%s4 + $0x3c] sm:$0xf]
  %v141 = vld [vmem:[%s5] sm:$0x1]
  %v158 = vunpack.c.l.b16 %v125
  %v159 = vunpack.c.l.b16 %v126
  %v160 = vunpack.c.l.b16 %v127
  %v161 = vunpack.c.l.b16 %v128
  %v162 = vunpack.c.l.b16 %v129
  %v163 = vunpack.c.l.b16 %v130
  %v164 = vunpack.c.l.b16 %v131
  %v165 = vunpack.c.l.b16 %v132
  %v166 = vunpack.c.l.b16 %v133
  %v167 = vunpack.c.l.b16 %v134
  %v168 = vunpack.c.l.b16 %v135
  %v169 = vunpack.c.l.b16 %v136
  %v170 = vunpack.c.l.b16 %v137
  %v171 = vunpack.c.l.b16 %v138
  %v172 = vunpack.c.l.b16 %v139
  %v173 = vunpack.c.l.b16 %v140
  %v174 = vpack.c.b16 %v159, %v158
  %v175 = vpack.c.b16 %v161, %v160
  %v176 = vpack.c.b16 %v163, %v162
  %v177 = vpack.c.b16 %v165, %v164
  %v178 = vpack.c.b16 %v167, %v166
  %v179 = vpack.c.b16 %v169, %v168
  %v180 = vpack.c.b16 %v171, %v170
  %v181 = vpack.c.b16 %v173, %v172
  %190 = vmatprep.subr.bf16.mxu0 0
  %191 = vmatpush1.bf16.msra.mxu0 %v174
  %192 = vmatprep.subr.bf16.mxu0 0
  %193 = vmatpush1.bf16.msra.mxu0 %v175
  %194 = vmatprep.subr.bf16.mxu0 0
  %195 = vmatpush1.bf16.msra.mxu0 %v176
  %196 = vmatprep.subr.bf16.mxu0 0
  %197 = vmatpush1.bf16.msra.mxu0 %v177
  %198 = vmatprep.subr.bf16.mxu0 0
  %199 = vmatpush1.bf16.msra.mxu0 %v178
  %200 = vmatprep.subr.bf16.mxu0 0
  %201 = vmatpush1.bf16.msra.mxu0 %v179
  %202 = vmatprep.subr.bf16.mxu0 0
  %203 = vmatpush1.bf16.msra.mxu0 %v180
  %204 = vmatprep.subr.bf16.mxu0 0
  %205 = vmatpush1.bf16.msra.mxu0 %v181
  %206 = vmatprep.subr.bf16.mxu0 0
  %207 = vmatpush1.bf16.msra.mxu0 0
  %208 = vmatprep.subr.bf16.mxu0 0
  %209 = vmatpush1.bf16.msra.mxu0 0
  %210 = vmatprep.subr.bf16.mxu0 0
  %211 = vmatpush1.bf16.msra.mxu0 0
  %212 = vmatprep.subr.bf16.mxu0 0
  %213 = vmatpush1.bf16.msra.mxu0 0
  %214 = vmatprep.subr.bf16.mxu0 0
  %215 = vmatpush1.bf16.msra.mxu0 0
  %216 = vmatprep.subr.bf16.mxu0 0
  %217 = vmatpush1.bf16.msra.mxu0 0
  %218 = vmatprep.subr.bf16.mxu0 0
  %219 = vmatpush1.bf16.msra.mxu0 0
  %220 = vmatprep.subr.bf16.mxu0 0
  %221 = vmatpush1.bf16.msra.mxu0 0
  %222 = vmatprep.mubr.bf16.mxu0 0
  %223 = vmatmul.mubr.bf16.gmra.mrb[0].mxu0 %v124
  %v224 = vpop.f32.mrb[0].mxu0
  %v225 = vadd.f32 %v141, %v224
  %v226 = vpop.f32.mrb[0].mxu0
  %v227 = vpop.f32.mrb[0].mxu0
  %v228 = vpop.f32.mrb[0].mxu0
  %229 = vdwg.mxu0
  %v230 = vmax.f32 %v225, 0.0
  %v231 = vpack.c.bf16 %v230, %v230
  %v232 = vld [vmem:[%s6] sm:$0xf]
  %v233 = vld [vmem:[%s6 + $0x4] sm:$0xf]
  %v234 = vld [vmem:[%s6 + $0x8] sm:$0xf]
  %v235 = vld [vmem:[%s6 + $0xc] sm:$0xf]
  %v236 = vld [vmem:[%s6 + $0x10] sm:$0xf]
  %v237 = vld [vmem:[%s6 + $0x14] sm:$0xf]
  %v238 = vld [vmem:[%s6 + $0x18] sm:$0xf]
  %v239 = vld [vmem:[%s6 + $0x1c] sm:$0xf]
  %v240 = vld [vmem:[%s7] sm:$0x1]
  %v249 = vunpack.c.l.b16 %v232
  %v250 = vunpack.c.l.b16 %v233
  %v251 = vunpack.c.l.b16 %v234
  %v252 = vunpack.c.l.b16 %v235
  %v253 = vunpack.c.l.b16 %v236
  %v254 = vunpack.c.l.b16 %v237
  %v255 = vunpack.c.l.b16 %v238
  %v256 = vunpack.c.l.b16 %v239
  %v257 = vpack.c.b16 %v250, %v249
  %v258 = vpack.c.b16 %v252, %v251
  %v259 = vpack.c.b16 %v254, %v253
  %v260 = vpack.c.b16 %v256, %v255
  %vm265 = vcmask 523264
  %v267 = vsel %vm265, %v231, 0
  %269 = vmatprep.subr.bf16.mxu0 0
  %270 = vmatpush1.bf16.msra.mxu0 %v257
  %271 = vmatprep.subr.bf16.mxu0 0
  %272 = vmatpush1.bf16.msra.mxu0 %v258
  %273 = vmatprep.subr.bf16.mxu0 0
  %274 = vmatpush1.bf16.msra.mxu0 %v259
  %275 = vmatprep.subr.bf16.mxu0 0
  %276 = vmatpush1.bf16.msra.mxu0 %v260
  %277 = vmatprep.subr.bf16.mxu0 0
  %278 = vmatpush1.bf16.msra.mxu0 0
  %279 = vmatprep.subr.bf16.mxu0 0
  %280 = vmatpush1.bf16.msra.mxu0 0
  %281 = vmatprep.subr.bf16.mxu0 0
  %282 = vmatpush1.bf16.msra.mxu0 0
  %283 = vmatprep.subr.bf16.mxu0 0
  %284 = vmatpush1.bf16.msra.mxu0 0
  %285 = vmatprep.subr.bf16.mxu0 0
  %286 = vmatpush1.bf16.msra.mxu0 0
  %287 = vmatprep.subr.bf16.mxu0 0
  %288 = vmatpush1.bf16.msra.mxu0 0
  %289 = vmatprep.subr.bf16.mxu0 0
  %290 = vmatpush1.bf16.msra.mxu0 0
  %291 = vmatprep.subr.bf16.mxu0 0
  %292 = vmatpush1.bf16.msra.mxu0 0
  %293 = vmatprep.subr.bf16.mxu0 0
  %294 = vmatpush1.bf16.msra.mxu0 0
  %295 = vmatprep.subr.bf16.mxu0 0
  %296 = vmatpush1.bf16.msra.mxu0 0
  %297 = vmatprep.subr.bf16.mxu0 0
  %298 = vmatpush1.bf16.msra.mxu0 0
  %299 = vmatprep.subr.bf16.mxu0 0
  %300 = vmatpush1.bf16.msra.mxu0 0
  %301 = vmatprep.mubr.bf16.mxu0 0
  %302 = vmatmul.mubr.bf16.gmra.mrb[0].mxu0 %v267
  %v303 = vpop.f32.mrb[0].mxu0
  %v304 = vadd.f32 %v240, %v303
  %v305 = vpop.f32.mrb[0].mxu0
  %v306 = vpop.f32.mrb[0].mxu0
  %v307 = vpop.f32.mrb[0].mxu0
  %308 = vdwg.mxu0
  %vm309 = vcmp.lt.s32.totalorder %v37, 3
  %v310 = vxor.u32 %v304, 2147483648
  %v311 = vmul.f32 %v310, 1.442695
  %v312 = vpow.pop %v311
  %v313 = vadd.f32 %v312, 1.0
  %v314 = vrcp.pop %v313
  %v315 = vmul.f32 1.0, %v314
  %v316 = vsel %vm309, %v315, %v304
  %317 = vst [vmem:[%s8] sm:$0x1] %v316
  // Predicated region
  $region29: #{actor_critic_forward.1} parent=0 // pred_check
    _
  $region30: #{actor_critic_forward.1} parent=0 // pred_check_branch
    %319 = sbr.rel (0) target = $region32
  $region31: #{actor_critic_forward.1} parent=0 // pred_region
    _
  $region32: #{actor_critic_forward.1} parent=0 // pred_fallthru
    _
  // Predicated region
  $region33: #{actor_critic_forward.1} parent=0 // pred_check
    _
  $region34: #{actor_critic_forward.1} parent=0 // pred_check_branch
    %321 = sbr.rel (0) target = $region36
  $region35: #{actor_critic_forward.1} parent=0 // pred_region
    _
  $region36: #{actor_critic_forward.1} parent=0 // pred_fallthru
    _

</llo_original>
